<compile_context>
chip_gen: v7x
topology: tpu7x:2x2x1
jax: 0.10.0
libtpu: 0.0.40
codegen_flags: <defaults>
</compile_context>

<pallas_src>
import jax
import jax.numpy as jnp
from jax.experimental import pallas as pl
from jax.experimental.pallas import tpu as pltpu


def get_conv1d_weights(nx, nf):
    # Deterministic init mirroring the PyTorch module:
    # every one of the nx rows is [0.000, 0.001, ..., (nf-1)*0.001]
    return jnp.tile(jnp.arange(nf, dtype=jnp.float32)[None, :] * 0.001, (nx, 1))


def _round_up(v, m):
    return ((v + m - 1) // m) * m


def _round_down(v, m):
    return (v // m) * m


# ----------------------------- kernels ---------------------------------------

def _conv1d_kernel_2d(x_ref, w_ref, b_ref, o_ref):
    # Whole K in one block: y_tile = x_tile @ w_tile + bias_tile
    acc = jnp.dot(x_ref[...], w_ref[...], preferred_element_type=jnp.float32)
    o_ref[...] = (acc + b_ref[...]).astype(o_ref.dtype)


def _conv1d_kernel_3d_f32out(x_ref, w_ref, b_ref, o_ref):
    # K tiled; accumulate directly into the resident f32 output block.
    k = pl.program_id(2)

    @pl.when(k == 0)
    def _():
        o_ref[...] = jnp.broadcast_to(b_ref[...].astype(jnp.float32), o_ref.shape)

    o_ref[...] += jnp.dot(x_ref[...], w_ref[...], preferred_element_type=jnp.float32)


def _conv1d_kernel_3d_acc(x_ref, w_ref, b_ref, o_ref, acc_ref):
    # K tiled; f32 scratch accumulator for non-f32 output dtypes.
    k = pl.program_id(2)

    @pl.when(k == 0)
    def _():
        acc_ref[...] = jnp.zeros_like(acc_ref)

    acc_ref[...] += jnp.dot(x_ref[...], w_ref[...], preferred_element_type=jnp.float32)

    @pl.when(k == pl.num_programs(2) - 1)
    def _():
        o_ref[...] = (acc_ref[...] + b_ref[...]).astype(o_ref.dtype)


# ----------------------------- wrapper ----------------------------------------

_VMEM_BUDGET_BYTES = 24 * 1024 * 1024   # design target for double-buffered tiles
_VMEM_LIMIT_BYTES = 32 * 1024 * 1024    # scoped VMEM limit (safe on v5e/v6e/v7x)


def conv1d_forward(x, weight, bias, *, tm=512, tn=512, tk=512, mxu_dtype=None):
    """GPT Conv1D forward: x: (..., nx), weight: (nx, nf), bias: (nf,) -> (..., nf)."""
    nx, nf = weight.shape
    size_out = x.shape[:-1] + (nf,)
    out_dtype = x.dtype

    x2d = x.reshape(-1, nx)                     # glue: flatten leading dims
    m = x2d.shape[0]

    # Optional low-precision MXU operands (f32 accumulation). Cast once in the
    # wrapper so HBM traffic / VMEM footprint are halved and the cast is not
    # redone per tile on the VPU.
    if mxu_dtype is not None:
        x_op = x2d.astype(mxu_dtype)
        w_op = weight.astype(mxu_dtype)
    else:
        x_op = x2d
        w_op = weight
    b_op = bias.reshape(1, nf)

    in_b = jnp.dtype(x_op.dtype).itemsize
    out_b = jnp.dtype(out_dtype).itemsize

    # ---- tile selection -------------------------------------------------------
    # tm: multiple of 8 (sublane) unless it is the full M extent.
    tm_des = max(8, _round_down(tm, 8))
    tm = m if m <= tm_des else tm_des
    # tn: multiple of 128 (lane-dense output stores) unless it is the full N extent.
    tn_des = max(128, _round_down(tn, 128))
    tn = nf if nf <= tn_des else tn_des

    num_m = pl.cdiv(m, tm)
    num_n = pl.cdiv(nf, tn)

    # Collapse K to a single block when the (tm, nx) / (nx, tn) operand tiles
    # still fit the VMEM budget -> 2-D grid, no accumulator revisits.
    fp_2d = (2 * in_b * (tm * nx + nx * tn)          # double-buffered x / W tiles
             + 2 * out_b * tm * tn                   # double-buffered output tile
             + 4 * 4 * max(tn, 128))                 # bias (tiny)
    collapse_k = fp_2d <= _VMEM_BUDGET_BYTES

    cparams = dict(vmem_limit_bytes=_VMEM_LIMIT_BYTES)

    if collapse_k:
        x_bytes = m * nx * in_b
        w_bytes = nx * nf * in_b
        # Keep the larger operand resident (fetched once), stream the other.
        # The inner (last) grid axis is the fast-changing one.
        m_outer = w_bytes * (num_m - 1) <= x_bytes * (num_n - 1)
        if m_outer:
            grid = (num_m, num_n)                    # N inner: x fetched once per row
            x_spec = pl.BlockSpec((tm, nx), lambda i, j: (i, 0))
            w_spec = pl.BlockSpec((nx, tn), lambda i, j: (0, j))
            b_spec = pl.BlockSpec((1, tn), lambda i, j: (0, j))
            o_spec = pl.BlockSpec((tm, tn), lambda i, j: (i, j))
            bytes_accessed = x_bytes + w_bytes * num_m + m * nf * out_b + nf * 4 * num_m
        else:
            grid = (num_n, num_m)                    # M inner: W fetched once per col
            x_spec = pl.BlockSpec((tm, nx), lambda j, i: (i, 0))
            w_spec = pl.BlockSpec((nx, tn), lambda j, i: (0, j))
            b_spec = pl.BlockSpec((1, tn), lambda j, i: (0, j))
            o_spec = pl.BlockSpec((tm, tn), lambda j, i: (i, j))
            bytes_accessed = x_bytes * num_n + w_bytes + m * nf * out_b + nf * 4

        cost = pl.CostEstimate(flops=2 * m * nx * nf, transcendentals=0,
                               bytes_accessed=int(bytes_accessed))

        out2d = pl.pallas_call(
            _conv1d_kernel_2d,
            out_shape=jax.ShapeDtypeStruct((m, nf), out_dtype),
            grid_spec=pltpu.PrefetchScalarGridSpec(
                num_scalar_prefetch=0,
                grid=grid,
                in_specs=[x_spec, w_spec, b_spec],
                out_specs=o_spec,
            ),
            compiler_params=pltpu.CompilerParams(
                dimension_semantics=("parallel", "parallel"), **cparams),
            cost_estimate=cost,
        )(x_op, w_op, b_op)

    else:
        # Large K: 3-D grid, K innermost ("arbitrary"), f32 accumulation.
        tk_des = max(128, _round_down(tk, 128))
        if nx % 128 == 0:
            tk_sel = 128
            cand = min(tk_des, nx)
            while cand >= 128:
                if nx % cand == 0:
                    tk_sel = cand
                    break
                cand -= 128
            tk = tk_sel
            kp = nx
        else:
            # Rare fallback: zero-pad K (safe for the reduction).
            tk = min(tk_des, _round_up(nx, 128))
            kp = _round_up(nx, tk)

        if kp != nx:
            x_op = jnp.pad(x_op, ((0, 0), (0, kp - nx)))
            w_op = jnp.pad(w_op, ((0, kp - nx), (0, 0)))

        num_k = kp // tk
        grid = (num_m, num_n, num_k)

        x_spec = pl.BlockSpec((tm, tk), lambda i, j, k: (i, k))
        w_spec = pl.BlockSpec((tk, tn), lambda i, j, k: (k, j))
        b_spec = pl.BlockSpec((1, tn), lambda i, j, k: (0, j))
        o_spec = pl.BlockSpec((tm, tn), lambda i, j, k: (i, j))

        bytes_accessed = (m * kp * in_b * num_n + kp * nf * in_b * num_m
                          + m * nf * out_b + nf * 4)
        cost = pl.CostEstimate(flops=2 * m * kp * nf, transcendentals=0,
                               bytes_accessed=int(bytes_accessed))

        if out_dtype == jnp.float32:
            kernel = _conv1d_kernel_3d_f32out
            scratch_shapes = []
        else:
            kernel = _conv1d_kernel_3d_acc
            scratch_shapes = [pltpu.VMEM((tm, tn), jnp.float32)]

        out2d = pl.pallas_call(
            kernel,
            out_shape=jax.ShapeDtypeStruct((m, nf), out_dtype),
            grid_spec=pltpu.PrefetchScalarGridSpec(
                num_scalar_prefetch=0,
                grid=grid,
                in_specs=[x_spec, w_spec, b_spec],
                out_specs=o_spec,
                scratch_shapes=scratch_shapes,
            ),
            compiler_params=pltpu.CompilerParams(
                dimension_semantics=("parallel", "parallel", "arbitrary"), **cparams),
            cost_estimate=cost,
        )(x_op, w_op, b_op)

    return out2d.reshape(size_out)


if __name__ == "__main__":
    key = jax.random.PRNGKey(0)

    # --- Small shapes consistent with the module: (batch, seq, nx) -> (batch, seq, nf)
    batch, seq, nx, nf = 2, 8, 32, 32
    x = jax.random.normal(key, (batch, seq, nx), dtype=jnp.float32)
    weight = get_conv1d_weights(nx, nf)            # (nx, nf)
    bias = jnp.zeros((nf,), dtype=jnp.float32)     # (nf,)

    out = jax.block_until_ready(conv1d_forward(x, weight, bias))
    ref = (x.reshape(-1, nx) @ weight + bias).reshape(batch, seq, nf)
    assert out.shape == (batch, seq, nf)
    assert jnp.allclose(out, ref, atol=1e-5, rtol=1e-5)

    # --- 2-D (K-collapsed) path with multiple, ragged M/N tiles (no padding pass).
    k1, k2, k3 = jax.random.split(jax.random.PRNGKey(1), 3)
    b2, s2, nx2, nf2 = 2, 272, 384, 640            # non-tile-multiple M and N
    x2 = jax.random.normal(k1, (b2, s2, nx2), dtype=jnp.float32)
    w2 = jax.random.normal(k2, (nx2, nf2), dtype=jnp.float32) * 0.02
    bi2 = jax.random.normal(k3, (nf2,), dtype=jnp.float32) * 0.1
    ref2 = (x2.reshape(-1, nx2) @ w2 + bi2).reshape(b2, s2, nf2)

    out2 = jax.block_until_ready(conv1d_forward(x2, w2, bi2))
    assert out2.shape == (b2, s2, nf2)
    assert jnp.allclose(out2, ref2, atol=1e-3, rtol=1e-3)

    # Same case with bf16 MXU operands (f32 accumulation) -- v6e/v7x fast path.
    out2_bf16 = jax.block_until_ready(conv1d_forward(x2, w2, bi2, mxu_dtype=jnp.bfloat16))
    assert jnp.allclose(out2_bf16, ref2, atol=3e-2, rtol=3e-2)

    # --- Large-K case exercising the 3-D (K-tiled) accumulate-into-o_ref path.
    k4, k5, k6 = jax.random.split(jax.random.PRNGKey(2), 3)
    b3, s3, nx3, nf3 = 4, 512, 4096, 512
    x3 = jax.random.normal(k4, (b3, s3, nx3), dtype=jnp.float32)
    w3 = jax.random.normal(k5, (nx3, nf3), dtype=jnp.float32) * 0.02
    bi3 = jax.random.normal(k6, (nf3,), dtype=jnp.float32) * 0.1
    ref3 = (x3.reshape(-1, nx3) @ w3 + bi3).reshape(b3, s3, nf3)

    out3 = jax.block_until_ready(conv1d_forward(x3, w3, bi3))
    assert out3.shape == (b3, s3, nf3)
    assert jnp.allclose(out3, ref3, atol=1e-2, rtol=1e-2)

    print("KERNEL_OK")
</pallas_src>

<mosaic_0001>
module attributes {stable_mosaic.version = 11 : i64} {
  func.func @_conv1d_kernel_2d(%arg0: i32, %arg1: i32, %arg2: memref<16x32xf32, #tpu.memory_space<vmem>>, %arg3: memref<32x32xf32, #tpu.memory_space<vmem>>, %arg4: memref<1x32xf32, #tpu.memory_space<vmem>>, %arg5: memref<16x32xf32, #tpu.memory_space<vmem>>) attributes {dimension_semantics = [#tpu.dimension_semantics<parallel>, #tpu.dimension_semantics<parallel>], iteration_bounds = array<i64: 1, 1>, scalar_prefetch = 0 : i64, scratch_operands = 0 : i64, tpu.core_type = #tpu.core_type<tc>, window_params = [{transform_indices = @transform_0, window_bounds = array<i64: 16, 32>}, {transform_indices = @transform_1, window_bounds = array<i64: 32, 32>}, {transform_indices = @transform_2, window_bounds = array<i64: 1, 32>}, {transform_indices = @transform_3, window_bounds = array<i64: 16, 32>}]} {
    %c0 = arith.constant 0 : index
    %c0_0 = arith.constant 0 : index
    %0 = vector.load %arg2[%c0, %c0_0] : memref<16x32xf32, #tpu.memory_space<vmem>>, vector<16x32xf32>
    %c0_1 = arith.constant 0 : index
    %c0_2 = arith.constant 0 : index
    %1 = vector.load %arg3[%c0_1, %c0_2] : memref<32x32xf32, #tpu.memory_space<vmem>>, vector<32x32xf32>
    %cst = arith.constant dense<0.000000e+00> : vector<16x32xf32>
    %2 = tpu.matmul %0, %1, %cst {dimension_numbers = #tpu.dot_dimension_numbers<[1], [0], [0], [1], [0, 0, 1, 1], [], []>} : vector<16x32xf32>, vector<32x32xf32>, vector<16x32xf32> -> vector<16x32xf32>
    %c0_3 = arith.constant 0 : index
    %c0_4 = arith.constant 0 : index
    %3 = vector.load %arg4[%c0_3, %c0_4] : memref<1x32xf32, #tpu.memory_space<vmem>>, vector<1x32xf32>
    %4 = vector.broadcast %3 : vector<1x32xf32> to vector<16x32xf32>
    %5 = arith.addf %2, %4 : vector<16x32xf32>
    %c0_5 = arith.constant 0 : index
    %c0_6 = arith.constant 0 : index
    %6 = vector.load %arg5[%c0_5, %c0_6] : memref<16x32xf32, #tpu.memory_space<vmem>>, vector<16x32xf32>
    tpu.vector_store %arg5[%c0_5, %c0_6], %5 {strides = array<i32>} : memref<16x32xf32, #tpu.memory_space<vmem>>, vector<16x32xf32>,
    return
  }
  func.func @transform_0(%arg0: i32, %arg1: i32) -> (i32, i32) {
    %c0_i32 = arith.constant 0 : i32
    %c0_i32_0 = arith.constant 0 : i32
    return %arg0, %c0_i32 : i32, i32
  }
  func.func @transform_1(%arg0: i32, %arg1: i32) -> (i32, i32) {
    %c0_i32 = arith.constant 0 : i32
    %c0_i32_0 = arith.constant 0 : i32
    return %c0_i32, %arg1 : i32, i32
  }
  func.func @transform_2(%arg0: i32, %arg1: i32) -> (i32, i32) {
    %c0_i32 = arith.constant 0 : i32
    %c0_i32_0 = arith.constant 0 : i32
    return %c0_i32, %arg1 : i32, i32
  }
  func.func @transform_3(%arg0: i32, %arg1: i32) -> (i32, i32) {
    %c0_i32 = arith.constant 0 : i32
    return %arg0, %arg1 : i32, i32
  }
}

</mosaic_0001>

<llo_original>
// kernel: tpu_custom_call.1
$region0: #{tpu_custom_call.1}
  #allocation0 [shape = 'u32[]', space=smem, size = 0x4, offset = 0x4, fixed_abs, tag = 'smem constant byte address 0x4 - core index']
  #allocation1 [shape = 'u32[144,128]{1,0:T(1,128)}', space=vmem, size = 0x12000, scoped, tag = 'internal scratch']
  %s0 = inlined_call_operand.hbm [shape: f32[16,32], index: 0, kind: input, shape index: {}]
  %s1 = inlined_call_operand.hbm [shape: f32[32,32], index: 1, kind: input, shape index: {}]
  %s2 = inlined_call_operand.vmem [shape: f32[1,32], index: 2, kind: input, shape index: {}]
  %s3 = inlined_call_operand.hbm [shape: f32[16,32], index: 3, kind: output, shape index: {}]
  %s4 = sld [smem:[#allocation0]]
  $region30: #{tpu_custom_call.1} parent=0
    _
  %s6 = ssub.s32 1, %s4
  %s7 = scalar_select 0, %s6, %s4
  $region1: #{tpu_custom_call.1} parent=0
    #allocation2 [shape = 'u8[8192]{0}', space=vmem, size = 0x2000, scoped, tag = 'input window, operand 0, single buffered']
    #allocation3 [shape = 's32[1]{0}', space=sflag, size = 0x4, scoped, tag = 'scoped memory for tpu_custom_call.1']
    #allocation4 [shape = 's32[1]{0}', space=sflag, size = 0x4, scoped, tag = 'scoped memory for tpu_custom_call.1']
    #allocation5 [shape = 'u8[16384]{0}', space=vmem, size = 0x4000, scoped, tag = 'input window, operand 1, single buffered']
    #allocation6 [shape = 's32[1]{0}', space=sflag, size = 0x4, scoped, tag = 'scoped memory for tpu_custom_call.1']
    #allocation7 [shape = 'u8[8192]{0}', space=vmem, size = 0x2000, scoped, tag = 'output window, operand 0, single buffered']
    %8 = vsyncpa [#allocation3], 0
    %9 = vsyncpa [#allocation6], 0
    %10 = vsyncpa [#allocation4], 0
    // Predicated region
    $region2: #{tpu_custom_call.1} parent=1 // pred_check
      _
    $region3: #{tpu_custom_call.1} parent=1 // pred_check_branch
      %12 = sbr.rel (0) target = $region5
    $region4: #{tpu_custom_call.1} parent=1 // pred_region
      %s14 = ssub.s32 256, 256
      %15 = vsyncadd [#allocation3], %s14
      %s16 = sshll.u32 [#allocation2], 4
      %s17 = int_to_ptr.vmem [resolvable:$true] %s16
      %22 = dma.hbm_to_vmem [thread:$0]  %s0, 256, %s17, [#allocation3], 128, 128, 8
    $region5: #{tpu_custom_call.1} parent=1 // pred_fallthru
      _
    // Predicated region
    $region6: #{tpu_custom_call.1} parent=1 // pred_check
      _
    $region7: #{tpu_custom_call.1} parent=1 // pred_check_branch
      %24 = sbr.rel (0) target = $region9
    $region8: #{tpu_custom_call.1} parent=1 // pred_region
      %s26 = ssub.s32 512, 512
      %27 = vsyncadd [#allocation6], %s26
      %s28 = sshll.u32 [#allocation5], 4
      %s29 = int_to_ptr.vmem [resolvable:$true] %s28
      %34 = dma.hbm_to_vmem [thread:$0]  %s1, 512, %s29, [#allocation6], 128, 128, 8
    $region9: #{tpu_custom_call.1} parent=1 // pred_fallthru
      _
    // Predicated region
    $region10: #{tpu_custom_call.1} parent=1 // pred_check
      _
    $region11: #{tpu_custom_call.1} parent=1 // pred_check_branch
      %36 = sbr.rel (0) target = $region13
    $region12: #{tpu_custom_call.1} parent=1 // pred_region
      _
    $region13: #{tpu_custom_call.1} parent=1 // pred_fallthru
      _
    // Predicated region
    $region14: #{tpu_custom_call.1} parent=1 // pred_check
      _
    $region15: #{tpu_custom_call.1} parent=1 // pred_check_branch
      %38 = sbr.rel (0) target = $region17
    $region16: #{tpu_custom_call.1} parent=1 // pred_region
      %39 = dma.done [#allocation3], 256
    $region17: #{tpu_custom_call.1} parent=1 // pred_fallthru
      _
    // Predicated region
    $region18: #{tpu_custom_call.1} parent=1 // pred_check
      _
    $region19: #{tpu_custom_call.1} parent=1 // pred_check_branch
      %41 = sbr.rel (0) target = $region21
    $region20: #{tpu_custom_call.1} parent=1 // pred_region
      %42 = dma.done [#allocation6], 512
    $region21: #{tpu_custom_call.1} parent=1 // pred_fallthru
      _
    %v43 = vld [vmem:[#allocation2] sm:$0xff]
    %v44 = vld [vmem:[#allocation2 + $0x8] sm:$0xff]
    %v45 = vld [vmem:[#allocation5] sm:$0xff]
    %v46 = vld [vmem:[#allocation5 + $0x8] sm:$0xff]
    %v47 = vld [vmem:[#allocation5 + $0x10] sm:$0xff]
    %v48 = vld [vmem:[#allocation5 + $0x18] sm:$0xff]
    %v49 = vld [vmem:[%s2] sm:$0x1]
    %v51 = vlaneseq
    %v52 = vshrl.u32 %v51, 7
    %v53 = vsub.s32 0, %v52
    %v54 = vrot.slane %v49, %v53
    %vm56 = vcmask 261120
    %v58 = vsel %vm56, %v43, 0
    %v61 = vsel %vm56, %v44, 0
    %63 = vmatprep.subr.mxu0 0.0
    %64 = vmatpush1.msra.mxu0 %v45
    %65 = vmatprep.subr.mxu0 0.0
    %66 = vmatpush1.msra.mxu0 %v46
    %67 = vmatprep.subr.mxu0 0.0
    %68 = vmatpush1.msra.mxu0 %v47
    %69 = vmatprep.subr.mxu0 0.0
    %70 = vmatpush1.msra.mxu0 %v48
    %71 = vmatprep.subr.mxu0 0.0
    %72 = vmatpush1.msra.mxu0 0.0
    %73 = vmatprep.subr.mxu0 0.0
    %74 = vmatpush1.msra.mxu0 0.0
    %75 = vmatprep.subr.mxu0 0.0
    %76 = vmatpush1.msra.mxu0 0.0
    %77 = vmatprep.subr.mxu0 0.0
    %78 = vmatpush1.msra.mxu0 0.0
    %79 = vmatprep.subr.mxu0 0.0
    %80 = vmatpush1.msra.mxu0 0.0
    %81 = vmatprep.subr.mxu0 0.0
    %82 = vmatpush1.msra.mxu0 0.0
    %83 = vmatprep.subr.mxu0 0.0
    %84 = vmatpush1.msra.mxu0 0.0
    %85 = vmatprep.subr.mxu0 0.0
    %86 = vmatpush1.msra.mxu0 0.0
    %87 = vmatprep.subr.mxu0 0.0
    %88 = vmatpush1.msra.mxu0 0.0
    %89 = vmatprep.subr.mxu0 0.0
    %90 = vmatpush1.msra.mxu0 0.0
    %91 = vmatprep.subr.mxu0 0.0
    %92 = vmatpush1.msra.mxu0 0.0
    %93 = vmatprep.subr.mxu0 0.0
    %94 = vmatpush1.msra.mxu0 0.0
    %95 = vmatprep.subr.mxu0 0.0
    %96 = vmatpush1.msra.mxu0 0.0
    %97 = vmatprep.subr.mxu0 0.0
    %98 = vmatpush1.msra.mxu0 0.0
    %99 = vmatprep.subr.mxu0 0.0
    %100 = vmatpush1.msra.mxu0 0.0
    %101 = vmatprep.subr.mxu0 0.0
    %102 = vmatpush1.msra.mxu0 0.0
    %103 = vmatprep.subr.mxu0 0.0
    %104 = vmatpush1.msra.mxu0 0.0
    %105 = vmatprep.subr.mxu0 0.0
    %106 = vmatpush1.msra.mxu0 0.0
    %107 = vmatprep.subr.mxu0 0.0
    %108 = vmatpush1.msra.mxu0 0.0
    %109 = vmatprep.subr.mxu0 0.0
    %110 = vmatpush1.msra.mxu0 0.0
    %111 = vmatprep.subr.mxu0 0.0
    %112 = vmatpush1.msra.mxu0 0.0
    %113 = vmatprep.subr.mxu0 0.0
    %114 = vmatpush1.msra.mxu0 0.0
    %115 = vmatprep.subr.mxu0 0.0
    %116 = vmatpush1.msra.mxu0 0.0
    %117 = vmatprep.subr.mxu0 0.0
    %118 = vmatpush1.msra.mxu0 0.0
    %119 = vmatprep.subr.mxu0 0.0
    %120 = vmatpush1.msra.mxu0 0.0
    %121 = vmatprep.subr.mxu0 0.0
    %122 = vmatpush1.msra.mxu0 0.0
    %123 = vmatprep.subr.mxu0 0.0
    %124 = vmatpush1.msra.mxu0 0.0
    %125 = vmatprep.subr.mxu0 0.0
    %126 = vmatpush1.msra.mxu0 0.0
    %127 = vmatprep.mubr.f32.mxu0 0.0
    %128 = vmatmul.mubr.f32.gmra.mrb[0].mxu0 %v58
    %v129 = vpop.f32.mrb[0].mxu0
    %v130 = vadd.f32 %v54, %v129
    %v131 = vpop.f32.mrb[0].mxu0
    %132 = vmatprep.mubr.f32.mxu0 0.0
    %133 = vmatmul.mubr.f32.gmra.mrb[0].mxu0 %v61
    %v134 = vpop.f32.mrb[0].mxu0
    %v135 = vadd.f32 %v54, %v134
    %v136 = vpop.f32.mrb[0].mxu0
    %137 = vdwg.mxu0
    %138 = vst.msk [vmem:[#allocation7] sm:$0xff] %vm56, %v130
    %139 = vst.msk [vmem:[#allocation7 + $0x8] sm:$0xff] %vm56, %v135
    // Predicated region
    $region22: #{tpu_custom_call.1} parent=1 // pred_check
      _
    $region23: #{tpu_custom_call.1} parent=1 // pred_check_branch
      %141 = sbr.rel (0) target = $region25
    $region24: #{tpu_custom_call.1} parent=1 // pred_region
      %s143 = ssub.s32 256, 256
      %144 = vsyncadd [#allocation4], %s143
      %s145 = sshll.u32 [#allocation7], 4
      %s146 = int_to_ptr.vmem [resolvable:$true] %s145
      %151 = dma.vmem_to_hbm [thread:$0]  %s146, 256, %s3, [#allocation4], 128, 128, 8
    $region25: #{tpu_custom_call.1} parent=1 // pred_fallthru
      _
    // Predicated region
    $region26: #{tpu_custom_call.1} parent=1 // pred_check
      _
    $region27: #{tpu_custom_call.1} parent=1 // pred_check_branch
      %153 = sbr.rel (0) target = $region29
    $region28: #{tpu_custom_call.1} parent=1 // pred_region
      %154 = dma.done [#allocation4], 256
    $region29: #{tpu_custom_call.1} parent=1 // pred_fallthru
      _
    %155 = vsyncpa [#allocation3], 1
    %156 = vsyncpa [#allocation6], 1
    %157 = vsyncpa [#allocation4], 1

</llo_original>
